<compile_context>
chip_gen: v7x
topology: tpu7x:2x2x1
jax: 0.10.0
libtpu: 0.0.40
codegen_flags: <defaults>
</compile_context>

<pallas_src>
import jax
import jax.numpy as jnp
from jax.experimental import pallas as pl
from jax.experimental.pallas import tpu as pltpu

EMO_DIM = 27
HIDDEN = 128
K_IN = 2 * EMO_DIM + 3          # 57 = self(27) + other(27) + context(3)
K_PAD = 64                      # sublane-aligned input width
TILE_B = 128                    # batch tile
NEG_MASK = -1e30


def _contagion_kernel(x_ref, w1_ref, b1_ref, w2_ref, b2_ref,
                      mask_ref, w3_ref, b3_ref, out_ref):
    """Fully fused two-head MLP on one batch tile.

    x_ref   : (TILE_B, 64)   zero-padded [self | other | context | 0-pad]
    w1_ref  : (64, 256)      [w1_pad | v1_pad],  b1_ref: (1, 256) = [b1 | c1]
    w2_ref  : (256, 128)     block-diag: v2 -> lanes 0:27, w2 -> lanes 64:128
    b2_ref  : (1, 128)       [c2 | -1e30 pad | b2]
    mask_ref: (1, 128)       additive softmax mask: 0 in lanes 0:64, -1e30 in 64:128
    w3_ref  : (1, 128)       susceptibility output row, zero in lanes 0:64
    b3_ref  : (1, 1)
    out_ref : (TILE_B, 128)  probs * susceptibility in lanes 0:27, zeros elsewhere
    """
    x = x_ref[...]

    # Stage 1: one 256-wide matmul computes both heads' first hidden layers.
    z1 = jnp.dot(x, w1_ref[...], preferred_element_type=jnp.float32) + b1_ref[...]
    z1 = jnp.maximum(z1, 0.0)                                   # (TILE_B, 256)

    # Stage 2: one block-diagonal 128-wide matmul computes the contagion logits
    # (lanes 0:27) and the susceptibility hidden pre-activation (lanes 64:128).
    z2 = jnp.dot(z1, w2_ref[...], preferred_element_type=jnp.float32) + b2_ref[...]

    # --- susceptibility head: ReLU -> (lane-dense dot with padded w3) -> sigmoid
    # Lanes 0:64 of w3 are zero, so the contagion / pad lanes contribute nothing.
    h2 = jnp.maximum(z2, 0.0)                                   # (TILE_B, 128)
    s_logit = jnp.sum(h2 * w3_ref[...], axis=-1, keepdims=True) + b3_ref[...]
    susceptibility = 1.0 / (1.0 + jnp.exp(-s_logit))            # (TILE_B, 1)

    # --- contagion head: masked, lane-dense softmax over the 128-lane slab ---
    # lanes 27:64 already hold -1e30 (bias), lanes 64:128 get -1e30 via mask.
    zm = z2 + mask_ref[...]
    m = jnp.max(zm, axis=-1, keepdims=True)
    e = jnp.exp(zm - m)                                         # padded lanes underflow to exactly 0
    denom = jnp.sum(e, axis=-1, keepdims=True)
    inv = pl.reciprocal(denom, approx=True)                     # EUP
    inv = inv * (2.0 - denom * inv)                             # one Newton step -> full f32 precision
    probs = e * inv                                             # (TILE_B, 128), zero outside lanes 0:27

    out_ref[...] = probs * susceptibility


def _init_linear(key, fan_in, fan_out):
    """torch.nn.Linear-style init; weight stored (in_features, out_features)."""
    kw, kb = jax.random.split(key)
    bound = 1.0 / jnp.sqrt(jnp.float32(fan_in))
    w = jax.random.uniform(kw, (fan_in, fan_out), jnp.float32, -bound, bound)
    b = jax.random.uniform(kb, (1, fan_out), jnp.float32, -bound, bound)
    return w, b


def make_params(seed: int = 0):
    """Raw (un-fused) parameters, mirroring the PyTorch module layout."""
    key = jax.random.PRNGKey(seed)
    ks = jax.random.split(key, 5)
    w1, b1 = _init_linear(ks[0], K_IN, HIDDEN)                  # (57, 128)
    w2, b2 = _init_linear(ks[1], HIDDEN, HIDDEN // 2)           # (128, 64)
    w3, b3 = _init_linear(ks[2], HIDDEN // 2, 1)                # (64, 1)
    v1, c1 = _init_linear(ks[3], 2 * EMO_DIM, HIDDEN)           # (54, 128)
    v2, c2 = _init_linear(ks[4], HIDDEN, EMO_DIM)               # (128, 27)
    return dict(w1=w1, b1=b1, w2=w2, b2=b2, w3=w3, b3=b3, v1=v1, c1=c1, v2=v2, c2=c2)


def fuse_params(p):
    """Pre-fuse the two heads into the kernel's padded/fused layout (done once)."""
    H, H2 = HIDDEN, HIDDEN // 2

    W1 = jnp.zeros((K_PAD, 2 * H), jnp.float32)
    W1 = W1.at[:K_IN, :H].set(p["w1"])                          # susceptibility layer 1
    W1 = W1.at[:2 * EMO_DIM, H:].set(p["v1"])                   # contagion layer 1 (no context rows)
    B1 = jnp.concatenate([p["b1"], p["c1"]], axis=1)            # (1, 256)

    W2 = jnp.zeros((2 * H, H), jnp.float32)
    W2 = W2.at[H:, :EMO_DIM].set(p["v2"])                       # contagion logits -> lanes 0:27
    W2 = W2.at[:H, H2:].set(p["w2"])                            # susceptibility hidden -> lanes 64:128
    B2 = jnp.full((1, H), NEG_MASK, jnp.float32)                # softmax-mask the pad lanes 27:64
    B2 = B2.at[:, :EMO_DIM].set(p["c2"])
    B2 = B2.at[:, H2:].set(p["b2"])

    MASK = jnp.zeros((1, H), jnp.float32).at[:, H2:].set(NEG_MASK)   # softmax mask for lanes 64:128

    W3 = jnp.zeros((1, H), jnp.float32).at[:, H2:].set(p["w3"].T)    # zero-padded susceptibility row

    return dict(W1=W1, B1=B1, W2=W2, B2=B2, MASK=MASK, W3=W3, b3=p["b3"])


def _round_up(n, m):
    return ((n + m - 1) // m) * m


@jax.jit
def emotional_contagion(fused, self_emotions, other_emotions, relationship_strength=0.5):
    """Pallas EmotionalContagionModel.forward.

    self_emotions / other_emotions: (27,) or (B, 27) float32.
    relationship_strength: traced scalar (no recompile per value).
    Returns (27,) or (B, 27) float32.
    """
    squeeze = self_emotions.ndim == 1
    se = jnp.atleast_2d(self_emotions).astype(jnp.float32)      # (B, 27)
    oe = jnp.atleast_2d(other_emotions).astype(jnp.float32)     # (B, 27)
    B = se.shape[0]

    rel = jnp.broadcast_to(jnp.asarray(relationship_strength, jnp.float32), (B, 1))
    ctx = jnp.concatenate([rel, jnp.full((B, 2), 0.5, jnp.float32)], axis=1)   # (B, 3)
    x = jnp.concatenate(
        [se, oe, ctx, jnp.zeros((B, K_PAD - K_IN), jnp.float32)], axis=1)      # (B, 64)

    b_pad = _round_up(B, TILE_B)
    if b_pad != B:
        x = jnp.pad(x, ((0, b_pad - B), (0, 0)))

    const = lambda i: (0, 0)
    out = pl.pallas_call(
        _contagion_kernel,
        out_shape=jax.ShapeDtypeStruct((b_pad, HIDDEN), jnp.float32),
        grid=(b_pad // TILE_B,),
        in_specs=[
            pl.BlockSpec((TILE_B, K_PAD), lambda i: (i, 0)),    # activations: tiled over batch
            pl.BlockSpec((K_PAD, 2 * HIDDEN), const),           # weights: resident (constant index)
            pl.BlockSpec((1, 2 * HIDDEN), const),
            pl.BlockSpec((2 * HIDDEN, HIDDEN), const),
            pl.BlockSpec((1, HIDDEN), const),
            pl.BlockSpec((1, HIDDEN), const),
            pl.BlockSpec((1, HIDDEN), const),
            pl.BlockSpec((1, 1), const),
        ],
        out_specs=pl.BlockSpec((TILE_B, HIDDEN), lambda i: (i, 0)),            # lane-dense output slab
        compiler_params=pltpu.CompilerParams(dimension_semantics=("parallel",)),
    )(x, fused["W1"], fused["B1"], fused["W2"], fused["B2"],
      fused["MASK"], fused["W3"], fused["b3"])

    out = out[:B, :EMO_DIM]
    return out[0] if squeeze else out


def _reference(p, self_emotions, other_emotions, relationship_strength=0.5):
    """Pure-JAX reference (un-fused), matching the PyTorch module exactly."""
    se = jnp.atleast_2d(self_emotions).astype(jnp.float32)
    oe = jnp.atleast_2d(other_emotions).astype(jnp.float32)
    B = se.shape[0]
    ctx = jnp.concatenate(
        [jnp.full((B, 1), relationship_strength, jnp.float32),
         jnp.full((B, 2), 0.5, jnp.float32)], axis=1)
    combined = jnp.concatenate([se, oe, ctx], axis=1)
    h = jax.nn.relu(combined @ p["w1"] + p["b1"])
    h = jax.nn.relu(h @ p["w2"] + p["b2"])
    s = jax.nn.sigmoid(h @ p["w3"] + p["b3"])                   # (B, 1)
    emo = jnp.concatenate([se, oe], axis=1)
    g = jax.nn.relu(emo @ p["v1"] + p["c1"])
    logits = g @ p["v2"] + p["c2"]
    out = jax.nn.softmax(logits, axis=-1) * s
    return out[0] if self_emotions.ndim == 1 else out


if __name__ == "__main__":
    key = jax.random.PRNGKey(0)
    k_self, k_other = jax.random.split(key)

    B = 4  # small demo batch; kernel pads/tiles to TILE_B internally
    self_emotions = jax.random.uniform(k_self, (B, EMO_DIM), jnp.float32)
    other_emotions = jax.random.uniform(k_other, (B, EMO_DIM), jnp.float32)

    raw = make_params(seed=0)
    fused = fuse_params(raw)

    # batched path
    out = emotional_contagion(fused, self_emotions, other_emotions, 0.5)
    out = jax.block_until_ready(out)
    ref = _reference(raw, self_emotions, other_emotions, 0.5)
    assert out.shape == (B, EMO_DIM)
    assert jnp.allclose(out, ref, atol=1e-5, rtol=1e-4), float(jnp.max(jnp.abs(out - ref)))

    # single-vector path (same signature as the original PyTorch forward);
    # a different relationship_strength must NOT trigger a recompile (traced data).
    out1 = emotional_contagion(fused, self_emotions[0], other_emotions[0], 0.7)
    out1 = jax.block_until_ready(out1)
    ref1 = _reference(raw, self_emotions[0], other_emotions[0], 0.7)
    assert out1.shape == (EMO_DIM,)
    assert jnp.allclose(out1, ref1, atol=1e-5, rtol=1e-4), float(jnp.max(jnp.abs(out1 - ref1)))

    print("KERNEL_OK")
</pallas_src>

<mosaic_0001>
module attributes {stable_mosaic.version = 11 : i64} {
  func.func @_contagion_kernel(%arg0: i32, %arg1: memref<128x64xf32, #tpu.memory_space<vmem>>, %arg2: memref<64x256xf32, #tpu.memory_space<vmem>>, %arg3: memref<1x256xf32, #tpu.memory_space<vmem>>, %arg4: memref<256x128xf32, #tpu.memory_space<vmem>>, %arg5: memref<1x128xf32, #tpu.memory_space<vmem>>, %arg6: memref<1x128xf32, #tpu.memory_space<vmem>>, %arg7: memref<1x128xf32, #tpu.memory_space<vmem>>, %arg8: memref<1x1xf32, #tpu.memory_space<vmem>>, %arg9: memref<128x128xf32, #tpu.memory_space<vmem>>) attributes {dimension_semantics = [#tpu.dimension_semantics<parallel>], iteration_bounds = array<i64: 1>, scalar_prefetch = 0 : i64, scratch_operands = 0 : i64, tpu.core_type = #tpu.core_type<tc>, window_params = [{transform_indices = @transform_0, window_bounds = array<i64: 128, 64>}, {pipeline_mode = #tpu.pipeline_mode<synchronous>, transform_indices = @transform_1, window_bounds = array<i64: 64, 256>}, {pipeline_mode = #tpu.pipeline_mode<synchronous>, transform_indices = @transform_2, window_bounds = array<i64: 1, 256>}, {pipeline_mode = #tpu.pipeline_mode<synchronous>, transform_indices = @transform_3, window_bounds = array<i64: 256, 128>}, {pipeline_mode = #tpu.pipeline_mode<synchronous>, transform_indices = @transform_4, window_bounds = array<i64: 1, 128>}, {pipeline_mode = #tpu.pipeline_mode<synchronous>, transform_indices = @transform_5, window_bounds = array<i64: 1, 128>}, {pipeline_mode = #tpu.pipeline_mode<synchronous>, transform_indices = @transform_6, window_bounds = array<i64: 1, 128>}, {pipeline_mode = #tpu.pipeline_mode<synchronous>, transform_indices = @transform_7, window_bounds = array<i64: 1, 1>}, {transform_indices = @transform_8, window_bounds = array<i64: 128, 128>}]} {
    %c0 = arith.constant 0 : index
    %c0_0 = arith.constant 0 : index
    %0 = vector.load %arg1[%c0, %c0_0] : memref<128x64xf32, #tpu.memory_space<vmem>>, vector<128x64xf32>
    %c0_1 = arith.constant 0 : index
    %c0_2 = arith.constant 0 : index
    %1 = vector.load %arg2[%c0_1, %c0_2] : memref<64x256xf32, #tpu.memory_space<vmem>>, vector<64x256xf32>
    %cst = arith.constant dense<0.000000e+00> : vector<128x256xf32>
    %2 = tpu.matmul %0, %1, %cst {dimension_numbers = #tpu.dot_dimension_numbers<[1], [0], [0], [1], [0, 0, 1, 1], [], []>} : vector<128x64xf32>, vector<64x256xf32>, vector<128x256xf32> -> vector<128x256xf32>
    %c0_3 = arith.constant 0 : index
    %c0_4 = arith.constant 0 : index
    %3 = vector.load %arg3[%c0_3, %c0_4] : memref<1x256xf32, #tpu.memory_space<vmem>>, vector<1x256xf32>
    %4 = vector.broadcast %3 : vector<1x256xf32> to vector<128x256xf32>
    %5 = arith.addf %2, %4 : vector<128x256xf32>
    %cst_5 = arith.constant 0.000000e+00 : f32
    %6 = vector.broadcast %cst_5 : f32 to vector<128x256xf32>
    %7 = arith.maximumf %5, %6 : vector<128x256xf32>
    %c0_6 = arith.constant 0 : index
    %c0_7 = arith.constant 0 : index
    %8 = vector.load %arg4[%c0_6, %c0_7] : memref<256x128xf32, #tpu.memory_space<vmem>>, vector<256x128xf32>
    %cst_8 = arith.constant dense<0.000000e+00> : vector<128x128xf32>
    %9 = tpu.matmul %7, %8, %cst_8 {dimension_numbers = #tpu.dot_dimension_numbers<[1], [0], [0], [1], [0, 0, 1, 1], [], []>} : vector<128x256xf32>, vector<256x128xf32>, vector<128x128xf32> -> vector<128x128xf32>
    %c0_9 = arith.constant 0 : index
    %c0_10 = arith.constant 0 : index
    %10 = vector.load %arg5[%c0_9, %c0_10] : memref<1x128xf32, #tpu.memory_space<vmem>>, vector<1x128xf32>
    %11 = vector.broadcast %10 : vector<1x128xf32> to vector<128x128xf32>
    %12 = arith.addf %9, %11 : vector<128x128xf32>
    %cst_11 = arith.constant 0.000000e+00 : f32
    %13 = vector.broadcast %cst_11 : f32 to vector<128x128xf32>
    %14 = arith.maximumf %12, %13 : vector<128x128xf32>
    %c0_12 = arith.constant 0 : index
    %c0_13 = arith.constant 0 : index
    %15 = vector.load %arg7[%c0_12, %c0_13] : memref<1x128xf32, #tpu.memory_space<vmem>>, vector<1x128xf32>
    %16 = vector.broadcast %15 : vector<1x128xf32> to vector<128x128xf32>
    %17 = arith.mulf %14, %16 : vector<128x128xf32>
    %cst_14 = arith.constant dense<0.000000e+00> : vector<128xf32>
    %18 = vector.multi_reduction <add>, %17, %cst_14 [1] : vector<128x128xf32> to vector<128xf32>
    %19 = vector.shape_cast %18 : vector<128xf32> to vector<128x1xf32>
    %c0_15 = arith.constant 0 : index
    %c0_16 = arith.constant 0 : index
    %20 = vector.load %arg8[%c0_15, %c0_16] : memref<1x1xf32, #tpu.memory_space<vmem>>, vector<1x1xf32>
    %21 = vector.broadcast %20 : vector<1x1xf32> to vector<128x1xf32>
    %22 = arith.addf %19, %21 : vector<128x1xf32>
    %cst_17 = arith.constant 0.000000e+00 : f32
    %23 = vector.broadcast %cst_17 : f32 to vector<128x1xf32>
    %24 = arith.subf %23, %22 : vector<128x1xf32>
    %25 = math.exp %24 : vector<128x1xf32>
    %cst_18 = arith.constant 1.000000e+00 : f32
    %26 = vector.broadcast %cst_18 : f32 to vector<128x1xf32>
    %27 = arith.addf %26, %25 : vector<128x1xf32>
    %cst_19 = arith.constant 1.000000e+00 : f32
    %28 = vector.broadcast %cst_19 : f32 to vector<128x1xf32>
    %29 = arith.divf %28, %27 : vector<128x1xf32>
    %c0_20 = arith.constant 0 : index
    %c0_21 = arith.constant 0 : index
    %30 = vector.load %arg6[%c0_20, %c0_21] : memref<1x128xf32, #tpu.memory_space<vmem>>, vector<1x128xf32>
    %31 = vector.broadcast %30 : vector<1x128xf32> to vector<128x128xf32>
    %32 = arith.addf %12, %31 : vector<128x128xf32>
    %cst_22 = arith.constant dense<0xFF800000> : vector<128xf32>
    %33 = vector.multi_reduction <maximumf>, %32, %cst_22 [1] : vector<128x128xf32> to vector<128xf32>
    %34 = vector.shape_cast %33 : vector<128xf32> to vector<128x1xf32>
    %35 = vector.broadcast %34 : vector<128x1xf32> to vector<128x128xf32>
    %36 = arith.subf %32, %35 : vector<128x128xf32>
    %37 = math.exp %36 : vector<128x128xf32>
    %cst_23 = arith.constant dense<0.000000e+00> : vector<128xf32>
    %38 = vector.multi_reduction <add>, %37, %cst_23 [1] : vector<128x128xf32> to vector<128xf32>
    %39 = vector.shape_cast %38 : vector<128xf32> to vector<128x1xf32>
    %40 = tpu.reciprocal %39 {approx = true} : vector<128x1xf32> -> vector<128x1xf32>
    %41 = arith.mulf %39, %40 : vector<128x1xf32>
    %cst_24 = arith.constant 2.000000e+00 : f32
    %42 = vector.broadcast %cst_24 : f32 to vector<128x1xf32>
    %43 = arith.subf %42, %41 : vector<128x1xf32>
    %44 = arith.mulf %40, %43 : vector<128x1xf32>
    %45 = vector.broadcast %44 : vector<128x1xf32> to vector<128x128xf32>
    %46 = arith.mulf %37, %45 : vector<128x128xf32>
    %47 = vector.broadcast %29 : vector<128x1xf32> to vector<128x128xf32>
    %48 = arith.mulf %46, %47 : vector<128x128xf32>
    %c0_25 = arith.constant 0 : index
    %c0_26 = arith.constant 0 : index
    %49 = vector.load %arg9[%c0_25, %c0_26] : memref<128x128xf32, #tpu.memory_space<vmem>>, vector<128x128xf32>
    tpu.vector_store %arg9[%c0_25, %c0_26], %48 {strides = array<i32>} : memref<128x128xf32, #tpu.memory_space<vmem>>, vector<128x128xf32>,
    return
  }
  func.func @transform_0(%arg0: i32) -> (i32, i32) {
    %c0_i32 = arith.constant 0 : i32
    %c0_i32_0 = arith.constant 0 : i32
    return %arg0, %c0_i32 : i32, i32
  }
  func.func @transform_1(%arg0: i32) -> (i32, i32) {
    %c0_i32 = arith.constant 0 : i32
    %c0_i32_0 = arith.constant 0 : i32
    %c0_i32_1 = arith.constant 0 : i32
    return %c0_i32, %c0_i32_0 : i32, i32
  }
  func.func @transform_2(%arg0: i32) -> (i32, i32) {
    %c0_i32 = arith.constant 0 : i32
    %c0_i32_0 = arith.constant 0 : i32
    %c0_i32_1 = arith.constant 0 : i32
    return %c0_i32, %c0_i32_0 : i32, i32
  }
  func.func @transform_3(%arg0: i32) -> (i32, i32) {
    %c0_i32 = arith.constant 0 : i32
    %c0_i32_0 = arith.constant 0 : i32
    %c0_i32_1 = arith.constant 0 : i32
    return %c0_i32, %c0_i32_0 : i32, i32
  }
  func.func @transform_4(%arg0: i32) -> (i32, i32) {
    %c0_i32 = arith.constant 0 : i32
    %c0_i32_0 = arith.constant 0 : i32
    %c0_i32_1 = arith.constant 0 : i32
    return %c0_i32, %c0_i32_0 : i32, i32
  }
  func.func @transform_5(%arg0: i32) -> (i32, i32) {
    %c0_i32 = arith.constant 0 : i32
    %c0_i32_0 = arith.constant 0 : i32
    %c0_i32_1 = arith.constant 0 : i32
    return %c0_i32, %c0_i32_0 : i32, i32
  }
  func.func @transform_6(%arg0: i32) -> (i32, i32) {
    %c0_i32 = arith.constant 0 : i32
    %c0_i32_0 = arith.constant 0 : i32
    %c0_i32_1 = arith.constant 0 : i32
    return %c0_i32, %c0_i32_0 : i32, i32
  }
  func.func @transform_7(%arg0: i32) -> (i32, i32) {
    %c0_i32 = arith.constant 0 : i32
    %c0_i32_0 = arith.constant 0 : i32
    %c0_i32_1 = arith.constant 0 : i32
    return %c0_i32, %c0_i32_0 : i32, i32
  }
  func.func @transform_8(%arg0: i32) -> (i32, i32) {
    %c0_i32 = arith.constant 0 : i32
    %c0_i32_0 = arith.constant 0 : i32
    return %arg0, %c0_i32 : i32, i32
  }
}

</mosaic_0001>

<llo_original>
// kernel: emotional_contagion.1
$region0: #{emotional_contagion.1}
  #allocation0 [shape = 'u32[]', space=smem, size = 0x4, offset = 0x4, fixed_abs, tag = 'smem constant byte address 0x4 - core index']
  #allocation1 [shape = 'u32[144,128]{1,0:T(1,128)}', space=vmem, size = 0x12000, scoped, tag = 'internal scratch']
  #allocation2 [shape = 'f32[1,1]{1,0:T(1,128)S(1)}', space=vmem, size = 0x200, scoped, tag = 'scoped memory for emotional_contagion.1']
  %s0 = inlined_call_operand.vmem [shape: f32[128,64], index: 0, kind: input, shape index: {}]
  %s1 = inlined_call_operand.vmem [shape: f32[64,256], index: 1, kind: input, shape index: {}]
  %s2 = inlined_call_operand.vmem [shape: f32[1,256], index: 2, kind: input, shape index: {}]
  %s3 = inlined_call_operand.hbm [shape: f32[256,128], index: 3, kind: input, shape index: {}]
  %s4 = inlined_call_operand.vmem [shape: f32[1,128], index: 4, kind: input, shape index: {}]
  %s5 = inlined_call_operand.vmem [shape: f32[1,128], index: 5, kind: input, shape index: {}]
  %s6 = inlined_call_operand.vmem [shape: f32[1,128], index: 6, kind: input, shape index: {}]
  %s7 = inlined_call_operand.<no memory space> [shape: f32[1,1], index: 7, kind: input, shape index: {}]
  %s8 = inlined_call_operand.vmem [shape: f32[128,128], index: 8, kind: output, shape index: {}]
  %s9 = sld [smem:[#allocation0]]
  $region46: #{emotional_contagion.1} parent=0
    _
  %s11 = ssub.s32 1, %s9
  %s12 = scalar_select 0, %s11, %s9
  %v13 = vstv %s7
  %14 = vst [vmem:[#allocation2] sm:$0x1] %v13
  $region1: #{emotional_contagion.1} parent=0
    #allocation3 [shape = 'u8[131072]{0}', space=vmem, size = 0x20000, scoped, tag = 'input window, operand 3, single buffered']
    #allocation4 [shape = 's32[1]{0}', space=sflag, size = 0x4, scoped, tag = 'scoped memory for emotional_contagion.1']
    %15 = vsyncpa [#allocation4], 0
    // Predicated region
    $region2: #{emotional_contagion.1} parent=1 // pred_check
      _
    $region3: #{emotional_contagion.1} parent=1 // pred_check_branch
      %17 = sbr.rel (0) target = $region5
    $region4: #{emotional_contagion.1} parent=1 // pred_region
      _
    $region5: #{emotional_contagion.1} parent=1 // pred_fallthru
      _
    // Predicated region
    $region6: #{emotional_contagion.1} parent=1 // pred_check
      _
    $region7: #{emotional_contagion.1} parent=1 // pred_check_branch
      %19 = sbr.rel (0) target = $region9
    $region8: #{emotional_contagion.1} parent=1 // pred_region
      _
    $region9: #{emotional_contagion.1} parent=1 // pred_fallthru
      _
    // Predicated region
    $region10: #{emotional_contagion.1} parent=1 // pred_check
      _
    $region11: #{emotional_contagion.1} parent=1 // pred_check_branch
      %21 = sbr.rel (0) target = $region13
    $region12: #{emotional_contagion.1} parent=1 // pred_region
      _
    $region13: #{emotional_contagion.1} parent=1 // pred_fallthru
      _
    // Predicated region
    $region14: #{emotional_contagion.1} parent=1 // pred_check
      _
    $region15: #{emotional_contagion.1} parent=1 // pred_check_branch
      %23 = sbr.rel (0) target = $region17
    $region16: #{emotional_contagion.1} parent=1 // pred_region
      %s25 = ssub.s32 4096, 4096
      %26 = vsyncadd [#allocation4], %s25
      %s27 = sshll.u32 [#allocation3], 4
      %s28 = int_to_ptr.vmem [resolvable:$true] %s27
      %33 = dma.hbm_to_vmem [thread:$0]  %s3, 4096, %s28, [#allocation4], 128, 128, 8
    $region17: #{emotional_contagion.1} parent=1 // pred_fallthru
      _
    // Predicated region
    $region18: #{emotional_contagion.1} parent=1 // pred_check
      _
    $region19: #{emotional_contagion.1} parent=1 // pred_check_branch
      %35 = sbr.rel (0) target = $region21
    $region20: #{emotional_contagion.1} parent=1 // pred_region
      _
    $region21: #{emotional_contagion.1} parent=1 // pred_fallthru
      _
    // Predicated region
    $region22: #{emotional_contagion.1} parent=1 // pred_check
      _
    $region23: #{emotional_contagion.1} parent=1 // pred_check_branch
      %37 = sbr.rel (0) target = $region25
    $region24: #{emotional_contagion.1} parent=1 // pred_region
      _
    $region25: #{emotional_contagion.1} parent=1 // pred_fallthru
      _
    // Predicated region
    $region26: #{emotional_contagion.1} parent=1 // pred_check
      _
    $region27: #{emotional_contagion.1} parent=1 // pred_check_branch
      %39 = sbr.rel (0) target = $region29
    $region28: #{emotional_contagion.1} parent=1 // pred_region
      _
    $region29: #{emotional_contagion.1} parent=1 // pred_fallthru
      _
    // Predicated region
    $region30: #{emotional_contagion.1} parent=1 // pred_check
      _
    $region31: #{emotional_contagion.1} parent=1 // pred_check_branch
      %41 = sbr.rel (0) target = $region33
    $region32: #{emotional_contagion.1} parent=1 // pred_region
      _
    $region33: #{emotional_contagion.1} parent=1 // pred_fallthru
      _
    // Predicated region
    $region34: #{emotional_contagion.1} parent=1 // pred_check
      _
    $region35: #{emotional_contagion.1} parent=1 // pred_check_branch
      %43 = sbr.rel (0) target = $region37
    $region36: #{emotional_contagion.1} parent=1 // pred_region
      %44 = dma.done [#allocation4], 4096
    $region37: #{emotional_contagion.1} parent=1 // pred_fallthru
      _
    %v45 = vld [vmem:[%s0] sm:$0xff]
    %v46 = vld [vmem:[%s0 + $0x8] sm:$0xff]
    %v47 = vld [vmem:[%s0 + $0x10] sm:$0xff]
    %v48 = vld [vmem:[%s0 + $0x18] sm:$0xff]
    %v49 = vld [vmem:[%s0 + $0x20] sm:$0xff]
    %v50 = vld [vmem:[%s0 + $0x28] sm:$0xff]
    %v51 = vld [vmem:[%s0 + $0x30] sm:$0xff]
    %v52 = vld [vmem:[%s0 + $0x38] sm:$0xff]
    %v53 = vld [vmem:[%s0 + $0x40] sm:$0xff]
    %v54 = vld [vmem:[%s0 + $0x48] sm:$0xff]
    %v55 = vld [vmem:[%s0 + $0x50] sm:$0xff]
    %v56 = vld [vmem:[%s0 + $0x58] sm:$0xff]
    %v57 = vld [vmem:[%s0 + $0x60] sm:$0xff]
    %v58 = vld [vmem:[%s0 + $0x68] sm:$0xff]
    %v59 = vld [vmem:[%s0 + $0x70] sm:$0xff]
    %v60 = vld [vmem:[%s0 + $0x78] sm:$0xff]
    %v61 = vld [vmem:[%s1] sm:$0xff]
    %v62 = vld [vmem:[%s1 + $0x8] sm:$0xff]
    %v63 = vld [vmem:[%s1 + $0x10] sm:$0xff]
    %v64 = vld [vmem:[%s1 + $0x18] sm:$0xff]
    %v65 = vld [vmem:[%s1 + $0x20] sm:$0xff]
    %v66 = vld [vmem:[%s1 + $0x28] sm:$0xff]
    %v67 = vld [vmem:[%s1 + $0x30] sm:$0xff]
    %v68 = vld [vmem:[%s1 + $0x38] sm:$0xff]
    %v69 = vld [vmem:[%s1 + $0x40] sm:$0xff]
    %v70 = vld [vmem:[%s1 + $0x48] sm:$0xff]
    %v71 = vld [vmem:[%s1 + $0x50] sm:$0xff]
    %v72 = vld [vmem:[%s1 + $0x58] sm:$0xff]
    %v73 = vld [vmem:[%s1 + $0x60] sm:$0xff]
    %v74 = vld [vmem:[%s1 + $0x68] sm:$0xff]
    %v75 = vld [vmem:[%s1 + $0x70] sm:$0xff]
    %v76 = vld [vmem:[%s1 + $0x78] sm:$0xff]
    %v77 = vld [vmem:[%s2] sm:$0x3]
    %v79 = vlaneseq
    %v80 = vshrl.u32 %v79, 7
    %v81 = vsub.s32 0, %v80
    %v82 = vrot.slane %v77, %v81
    %v83 = vlaneseq
    %v84 = vshrl.u32 %v83, 7
    %v85 = vsub.s32 1, %v84
    %v86 = vrot.slane %v77, %v85
    %vm89 = vcmask 523264
    %v91 = vsel %vm89, %v45, 0
    %v94 = vsel %vm89, %v46, 0
    %v97 = vsel %vm89, %v47, 0
    %v100 = vsel %vm89, %v48, 0
    %v103 = vsel %vm89, %v49, 0
    %v106 = vsel %vm89, %v50, 0
    %v109 = vsel %vm89, %v51, 0
    %v112 = vsel %vm89, %v52, 0
    %v115 = vsel %vm89, %v53, 0
    %v118 = vsel %vm89, %v54, 0
    %v121 = vsel %vm89, %v55, 0
    %v124 = vsel %vm89, %v56, 0
    %v127 = vsel %vm89, %v57, 0
    %v130 = vsel %vm89, %v58, 0
    %v133 = vsel %vm89, %v59, 0
    %v136 = vsel %vm89, %v60, 0
    %138 = vmatprep.subr.mxu0 %v62
    %139 = vmatpush1.msra.mxu0 %v61
    %140 = vmatprep.subr.mxu0 %v64
    %141 = vmatpush1.msra.mxu0 %v63
    %142 = vmatprep.subr.mxu0 %v66
    %143 = vmatpush1.msra.mxu0 %v65
    %144 = vmatprep.subr.mxu0 %v68
    %145 = vmatpush1.msra.mxu0 %v67
    %146 = vmatprep.subr.mxu0 %v70
    %147 = vmatpush1.msra.mxu0 %v69
    %148 = vmatprep.subr.mxu0 %v72
    %149 = vmatpush1.msra.mxu0 %v71
    %150 = vmatprep.subr.mxu0 %v74
    %151 = vmatpush1.msra.mxu0 %v73
    %152 = vmatprep.subr.mxu0 %v76
    %153 = vmatpush1.msra.mxu0 %v75
    %154 = vmatprep.subr.mxu0 0.0
    %155 = vmatpush1.msra.mxu0 0.0
    %156 = vmatprep.subr.mxu0 0.0
    %157 = vmatpush1.msra.mxu0 0.0
    %158 = vmatprep.subr.mxu0 0.0
    %159 = vmatpush1.msra.mxu0 0.0
    %160 = vmatprep.subr.mxu0 0.0
    %161 = vmatpush1.msra.mxu0 0.0
    %162 = vmatprep.subr.mxu0 0.0
    %163 = vmatpush1.msra.mxu0 0.0
    %164 = vmatprep.subr.mxu0 0.0
    %165 = vmatpush1.msra.mxu0 0.0
    %166 = vmatprep.subr.mxu0 0.0
    %167 = vmatpush1.msra.mxu0 0.0
    %168 = vmatprep.subr.mxu0 0.0
    %169 = vmatpush1.msra.mxu0 0.0
    %170 = vmatprep.subr.mxu0 0.0
    %171 = vmatpush1.msra.mxu0 0.0
    %172 = vmatprep.subr.mxu0 0.0
    %173 = vmatpush1.msra.mxu0 0.0
    %174 = vmatprep.subr.mxu0 0.0
    %175 = vmatpush1.msra.mxu0 0.0
    %176 = vmatprep.subr.mxu0 0.0
    %177 = vmatpush1.msra.mxu0 0.0
    %178 = vmatprep.subr.mxu0 0.0
    %179 = vmatpush1.msra.mxu0 0.0
    %180 = vmatprep.subr.mxu0 0.0
    %181 = vmatpush1.msra.mxu0 0.0
    %182 = vmatprep.subr.mxu0 0.0
    %183 = vmatpush1.msra.mxu0 0.0
    %184 = vmatprep.subr.mxu0 0.0
    %185 = vmatpush1.msra.mxu0 0.0
    %186 = vmatprep.subr.mxu0 0.0
    %187 = vmatpush1.msra.mxu0 0.0
    %188 = vmatprep.subr.mxu0 0.0
    %189 = vmatpush1.msra.mxu0 0.0
    %190 = vmatprep.subr.mxu0 0.0
    %191 = vmatpush1.msra.mxu0 0.0
    %192 = vmatprep.subr.mxu0 0.0
    %193 = vmatpush1.msra.mxu0 0.0
    %194 = vmatprep.subr.mxu0 0.0
    %195 = vmatpush1.msra.mxu0 0.0
    %196 = vmatprep.subr.mxu0 0.0
    %197 = vmatpush1.msra.mxu0 0.0
    %198 = vmatprep.subr.mxu0 0.0
    %199 = vmatpush1.msra.mxu0 0.0
    %200 = vmatprep.subr.mxu0 0.0
    %201 = vmatpush1.msra.mxu0 0.0
    %202 = vmatprep.mubr.f32.mxu0 0.0
    %203 = vmatmul.mubr.f32.gmra.mrb[0].mxu0 %v91
    %v204 = vpop.f32.mrb[0].mxu0
    %v205 = vadd.f32 %v82, %v204
    %v206 = vpop.f32.mrb[0].mxu0
    %v207 = vadd.f32 %v86, %v206
    %208 = vmatprep.mubr.f32.mxu0 0.0
    %209 = vmatmul.mubr.f32.gmra.mrb[0].mxu0 %v94
    %v210 = vpop.f32.mrb[0].mxu0
    %v211 = vadd.f32 %v82, %v210
    %v212 = vpop.f32.mrb[0].mxu0
    %v213 = vadd.f32 %v86, %v212
    %214 = vmatprep.mubr.f32.mxu0 0.0
    %215 = vmatmul.mubr.f32.gmra.mrb[0].mxu0 %v97
    %v216 = vpop.f32.mrb[0].mxu0
    %v217 = vadd.f32 %v82, %v216
    %v218 = vpop.f32.mrb[0].mxu0
    %v219 = vadd.f32 %v86, %v218
    %220 = vmatprep.mubr.f32.mxu0 0.0
    %221 = vmatmul.mubr.f32.gmra.mrb[0].mxu0 %v100
    %v222 = vpop.f32.mrb[0].mxu0
    %v223 = vadd.f32 %v82, %v222
    %v224 = vpop.f32.mrb[0].mxu0
    %v225 = vadd.f32 %v86, %v224
    %226 = vmatprep.mubr.f32.mxu0 0.0
    %227 = vmatmul.mubr.f32.gmra.mrb[0].mxu0 %v103
    %v228 = vpop.f32.mrb[0].mxu0
    %v229 = vadd.f32 %v82, %v228
    %v230 = vpop.f32.mrb[0].mxu0
    %v231 = vadd.f32 %v86, %v230
    %232 = vmatprep.mubr.f32.mxu0 0.0
    %233 = vmatmul.mubr.f32.gmra.mrb[0].mxu0 %v106
    %v234 = vpop.f32.mrb[0].mxu0
    %v235 = vadd.f32 %v82, %v234
    %v236 = vpop.f32.mrb[0].mxu0
    %v237 = vadd.f32 %v86, %v236
    %238 = vmatprep.mubr.f32.mxu0 0.0
    %239 = vmatmul.mubr.f32.gmra.mrb[0].mxu0 %v109
    %v240 = vpop.f32.mrb[0].mxu0
    %v241 = vadd.f32 %v82, %v240
    %v242 = vpop.f32.mrb[0].mxu0
    %v243 = vadd.f32 %v86, %v242
    %244 = vmatprep.mubr.f32.mxu0 0.0
    %245 = vmatmul.mubr.f32.gmra.mrb[0].mxu0 %v112
    %v246 = vpop.f32.mrb[0].mxu0
    %v247 = vadd.f32 %v82, %v246
    %v248 = vpop.f32.mrb[0].mxu0
    %v249 = vadd.f32 %v86, %v248
    %250 = vmatprep.mubr.f32.mxu0 0.0
    %251 = vmatmul.mubr.f32.gmra.mrb[0].mxu0 %v115
    %v252 = vpop.f32.mrb[0].mxu0
    %v253 = vadd.f32 %v82, %v252
    %v254 = vpop.f32.mrb[0].mxu0
    %v255 = vadd.f32 %v86, %v254
    %256 = vmatprep.mubr.f32.mxu0 0.0
    %257 = vmatmul.mubr.f32.gmra.mrb[0].mxu0 %v118
    %v258 = vpop.f32.mrb[0].mxu0
    %v259 = vadd.f32 %v82, %v258
    %v260 = vpop.f32.mrb[0].mxu0
    %v261 = vadd.f32 %v86, %v260
    %262 = vmatprep.mubr.f32.mxu0 0.0
    %263 = vmatmul.mubr.f32.gmra.mrb[0].mxu0 %v121
    %v264 = vpop.f32.mrb[0].mxu0
    %v265 = vadd.f32 %v82, %v264
    %v266 = vpop.f32.mrb[0].mxu0
    %v267 = vadd.f32 %v86, %v266
    %268 = vmatprep.mubr.f32.mxu0 0.0
    %269 = vmatmul.mubr.f32.gmra.mrb[0].mxu0 %v124
    %v270 = vpop.f32.mrb[0].mxu0
    %v271 = vadd.f32 %v82, %v270
    %v272 = vpop.f32.mrb[0].mxu0
    %v273 = vadd.f32 %v86, %v272
    %274 = vmatprep.mubr.f32.mxu0 0.0
    %275 = vmatmul.mubr.f32.gmra.mrb[0].mxu0 %v127
    %v276 = vpop.f32.mrb[0].mxu0
    %v277 = vadd.f32 %v82, %v276
    %v278 = vpop.f32.mrb[0].mxu0
    %v279 = vadd.f32 %v86, %v278
    %280 = vmatprep.mubr.f32.mxu0 0.0
    %281 = vmatmul.mubr.f32.gmra.mrb[0].mxu0 %v130
    %v282 = vpop.f32.mrb[0].mxu0
    %v283 = vadd.f32 %v82, %v282
    %v284 = vpop.f32.mrb[0].mxu0
    %v285 = vadd.f32 %v86, %v284
    %286 = vmatprep.mubr.f32.mxu0 0.0
    %287 = vmatmul.mubr.f32.gmra.mrb[0].mxu0 %v133
    %v288 = vpop.f32.mrb[0].mxu0
    %v289 = vadd.f32 %v82, %v288
    %v290 = vpop.f32.mrb[0].mxu0
    %v291 = vadd.f32 %v86, %v290
    %292 = vmatprep.mubr.f32.mxu0 0.0
    %293 = vmatmul.mubr.f32.gmra.mrb[0].mxu0 %v136
    %v294 = vpop.f32.mrb[0].mxu0
    %v295 = vadd.f32 %v82, %v294
    %v296 = vpop.f32.mrb[0].mxu0
    %v297 = vadd.f32 %v86, %v296
    %298 = vdwg.mxu0
    %v299 = vmax.f32 %v205, 0.0
    %v300 = vmax.f32 %v207, 0.0
    %v301 = vmax.f32 %v211, 0.0
    %v302 = vmax.f32 %v213, 0.0
    %v303 = vmax.f32 %v217, 0.0
    %v304 = vmax.f32 %v219, 0.0
    %v305 = vmax.f32 %v223, 0.0
    %v306 = vmax.f32 %v225, 0.0
    %v307 = vmax.f32 %v229, 0.0
    %v308 = vmax.f32 %v231, 0.0
    %v309 = vmax.f32 %v235, 0.0
    %v310 = vmax.f32 %v237, 0.0
    %v311 = vmax.f32 %v241, 0.0
    %v312 = vmax.f32 %v243, 0.0
    %v313 = vmax.f32 %v247, 0.0
    %v314 = vmax.f32 %v249, 0.0
    %v315 = vmax.f32 %v253, 0.0
    %v316 = vmax.f32 %v255, 0.0
    %v317 = vmax.f32 %v259, 0.0
    %v318 = vmax.f32 %v261, 0.0
    %v319 = vmax.f32 %v265, 0.0
    %v320 = vmax.f32 %v267, 0.0
    %v321 = vmax.f32 %v271, 0.0
    %v322 = vmax.f32 %v273, 0.0
    %v323 = vmax.f32 %v277, 0.0
    %v324 = vmax.f32 %v279, 0.0
    %v325 = vmax.f32 %v283, 0.0
    %v326 = vmax.f32 %v285, 0.0
    %v327 = vmax.f32 %v289, 0.0
    %v328 = vmax.f32 %v291, 0.0
    %v329 = vmax.f32 %v295, 0.0
    %v330 = vmax.f32 %v297, 0.0
    %v331 = vld [vmem:[#allocation3] sm:$0xff]
    %v332 = vld [vmem:[#allocation3 + $0x8] sm:$0xff]
    %v333 = vld [vmem:[#allocation3 + $0x10] sm:$0xff]
    %v334 = vld [vmem:[#allocation3 + $0x18] sm:$0xff]
    %v335 = vld [vmem:[#allocation3 + $0x20] sm:$0xff]
    %v336 = vld [vmem:[#allocation3 + $0x28] sm:$0xff]
    %v337 = vld [vmem:[#allocation3 + $0x30] sm:$0xff]
    %v338 = vld [vmem:[#allocation3 + $0x38] sm:$0xff]
    %v339 = vld [vmem:[#allocation3 + $0x40] sm:$0xff]
    %v340 = vld [vmem:[#allocation3 + $0x48] sm:$0xff]
    %v341 = vld [vmem:[#allocation3 + $0x50] sm:$0xff]
    %v342 = vld [vmem:[#allocation3 + $0x58] sm:$0xff]
    %v343 = vld [vmem:[#allocation3 + $0x60] sm:$0xff]
    %v344 = vld [vmem:[#allocation3 + $0x68] sm:$0xff]
    %v345 = vld [vmem:[#allocation3 + $0x70] sm:$0xff]
    %v346 = vld [vmem:[#allocation3 + $0x78] sm:$0xff]
    %v347 = vld [vmem:[#allocation3 + $0x80] sm:$0xff]
    %v348 = vld [vmem:[#allocation3 + $0x88] sm:$0xff]
    %v349 = vld [vmem:[#allocation3 + $0x90] sm:$0xff]
    %v350 = vld [vmem:[#allocation3 + $0x98] sm:$0xff]
    %v351 = vld [vmem:[#allocation3 + $0xa0] sm:$0xff]
    %v352 = vld [vmem:[#allocation3 + $0xa8] sm:$0xff]
    %v353 = vld [vmem:[#allocation3 + $0xb0] sm:$0xff]
    %v354 = vld [vmem:[#allocation3 + $0xb8] sm:$0xff]
    %v355 = vld [vmem:[#allocation3 + $0xc0] sm:$0xff]
    %v356 = vld [vmem:[#allocation3 + $0xc8] sm:$0xff]
    %v357 = vld [vmem:[#allocation3 + $0xd0] sm:$0xff]
    %v358 = vld [vmem:[#allocation3 + $0xd8] sm:$0xff]
    %v359 = vld [vmem:[#allocation3 + $0xe0] sm:$0xff]
    %v360 = vld [vmem:[#allocation3 + $0xe8] sm:$0xff]
    %v361 = vld [vmem:[#allocation3 + $0xf0] sm:$0xff]
    %v362 = vld [vmem:[#allocation3 + $0xf8] sm:$0xff]
    %v363 = vld [vmem:[%s4] sm:$0x1]
    %v365 = vlaneseq
    %v366 = vshrl.u32 %v365, 7
    %v367 = vsub.s32 0, %v366
    %v368 = vrot.slane %v363, %v367
    %370 = vmatprep.subr.mxu0 0.0
    %371 = vmatpush1.msra.mxu0 %v331
    %372 = vmatprep.subr.mxu0 0.0
    %373 = vmatpush1.msra.mxu0 %v332
    %374 = vmatprep.subr.mxu0 0.0
    %375 = vmatpush1.msra.mxu0 %v333
    %376 = vmatprep.subr.mxu0 0.0
    %377 = vmatpush1.msra.mxu0 %v334
    %378 = vmatprep.subr.mxu0 0.0
    %379 = vmatpush1.msra.mxu0 %v335
    %380 = vmatprep.subr.mxu0 0.0
    %381 = vmatpush1.msra.mxu0 %v336
    %382 = vmatprep.subr.mxu0 0.0
    %383 = vmatpush1.msra.mxu0 %v337
    %384 = vmatprep.subr.mxu0 0.0
    %385 = vmatpush1.msra.mxu0 %v338
    %386 = vmatprep.subr.mxu0 0.0
    %387 = vmatpush1.msra.mxu0 %v339
    %388 = vmatprep.subr.mxu0 0.0
    %389 = vmatpush1.msra.mxu0 %v340
    %390 = vmatprep.subr.mxu0 0.0
    %391 = vmatpush1.msra.mxu0 %v341
    %392 = vmatprep.subr.mxu0 0.0
    %393 = vmatpush1.msra.mxu0 %v342
    %394 = vmatprep.subr.mxu0 0.0
    %395 = vmatpush1.msra.mxu0 %v343
    %396 = vmatprep.subr.mxu0 0.0
    %397 = vmatpush1.msra.mxu0 %v344
    %398 = vmatprep.subr.mxu0 0.0
    %399 = vmatpush1.msra.mxu0 %v345
    %400 = vmatprep.subr.mxu0 0.0
    %401 = vmatpush1.msra.mxu0 %v346
    %402 = vmatprep.subr.mxu0 0.0
    %403 = vmatpush1.msra.mxu0 %v347
    %404 = vmatprep.subr.mxu0 0.0
    %405 = vmatpush1.msra.mxu0 %v348
    %406 = vmatprep.subr.mxu0 0.0
    %407 = vmatpush1.msra.mxu0 %v349
    %408 = vmatprep.subr.mxu0 0.0
    %409 = vmatpush1.msra.mxu0 %v350
    %410 = vmatprep.subr.mxu0 0.0
    %411 = vmatpush1.msra.mxu0 %v351
    %412 = vmatprep.subr.mxu0 0.0
    %413 = vmatpush1.msra.mxu0 %v352
    %414 = vmatprep.subr.mxu0 0.0
    %415 = vmatpush1.msra.mxu0 %v353
    %416 = vmatprep.subr.mxu0 0.0
    %417 = vmatpush1.msra.mxu0 %v354
    %418 = vmatprep.subr.mxu0 0.0
    %419 = vmatpush1.msra.mxu0 %v355
    %420 = vmatprep.subr.mxu0 0.0
    %421 = vmatpush1.msra.mxu0 %v356
    %422 = vmatprep.subr.mxu0 0.0
    %423 = vmatpush1.msra.mxu0 %v357
    %424 = vmatprep.subr.mxu0 0.0
    %425 = vmatpush1.msra.mxu0 %v358
    %426 = vmatprep.subr.mxu0 0.0
    %427 = vmatpush1.msra.mxu0 %v359
    %428 = vmatprep.subr.mxu0 0.0
    %429 = vmatpush1.msra.mxu0 %v360
    %430 = vmatprep.subr.mxu0 0.0
    %431 = vmatpush1.msra.mxu0 %v361
    %432 = vmatprep.subr.mxu0 0.0
    %433 = vmatpush1.msra.mxu0 %v362
    %434 = vmatprep.mubr.f32.mxu0 %v300
    %435 = vmatmul.mubr.f32.gmra.mrb[0].mxu0 %v299
    %v436 = vpop.f32.mrb[0].mxu0
    %v437 = vadd.f32 %v368, %v436
    %v438 = vpop.f32.mrb[0].mxu0
    %439 = vmatprep.mubr.f32.mxu0 %v302
    %440 = vmatmul.mubr.f32.gmra.mrb[0].mxu0 %v301
    %v441 = vpop.f32.mrb[0].mxu0
    %v442 = vadd.f32 %v368, %v441
    %v443 = vpop.f32.mrb[0].mxu0
    %444 = vmatprep.mubr.f32.mxu0 %v304
    %445 = vmatmul.mubr.f32.gmra.mrb[0].mxu0 %v303
    %v446 = vpop.f32.mrb[0].mxu0
    %v447 = vadd.f32 %v368, %v446
    %v448 = vpop.f32.mrb[0].mxu0
    %449 = vmatprep.mubr.f32.mxu0 %v306
    %450 = vmatmul.mubr.f32.gmra.mrb[0].mxu0 %v305
    %v451 = vpop.f32.mrb[0].mxu0
    %v452 = vadd.f32 %v368, %v451
    %v453 = vpop.f32.mrb[0].mxu0
    %454 = vmatprep.mubr.f32.mxu0 %v308
    %455 = vmatmul.mubr.f32.gmra.mrb[0].mxu0 %v307
    %v456 = vpop.f32.mrb[0].mxu0
    %v457 = vadd.f32 %v368, %v456
    %v458 = vpop.f32.mrb[0].mxu0
    %459 = vmatprep.mubr.f32.mxu0 %v310
    %460 = vmatmul.mubr.f32.gmra.mrb[0].mxu0 %v309
    %v461 = vpop.f32.mrb[0].mxu0
    %v462 = vadd.f32 %v368, %v461
    %v463 = vpop.f32.mrb[0].mxu0
    %464 = vmatprep.mubr.f32.mxu0 %v312
    %465 = vmatmul.mubr.f32.gmra.mrb[0].mxu0 %v311
    %v466 = vpop.f32.mrb[0].mxu0
    %v467 = vadd.f32 %v368, %v466
    %v468 = vpop.f32.mrb[0].mxu0
    %469 = vmatprep.mubr.f32.mxu0 %v314
    %470 = vmatmul.mubr.f32.gmra.mrb[0].mxu0 %v313
    %v471 = vpop.f32.mrb[0].mxu0
    %v472 = vadd.f32 %v368, %v471
    %v473 = vpop.f32.mrb[0].mxu0
    %474 = vmatprep.mubr.f32.mxu0 %v316
    %475 = vmatmul.mubr.f32.gmra.mrb[0].mxu0 %v315
    %v476 = vpop.f32.mrb[0].mxu0
    %v477 = vadd.f32 %v368, %v476
    %v478 = vpop.f32.mrb[0].mxu0
    %479 = vmatprep.mubr.f32.mxu0 %v318
    %480 = vmatmul.mubr.f32.gmra.mrb[0].mxu0 %v317
    %v481 = vpop.f32.mrb[0].mxu0
    %v482 = vadd.f32 %v368, %v481
    %v483 = vpop.f32.mrb[0].mxu0
    %484 = vmatprep.mubr.f32.mxu0 %v320
    %485 = vmatmul.mubr.f32.gmra.mrb[0].mxu0 %v319
    %v486 = vpop.f32.mrb[0].mxu0
    %v487 = vadd.f32 %v368, %v486
    %v488 = vpop.f32.mrb[0].mxu0
    %489 = vmatprep.mubr.f32.mxu0 %v322
    %490 = vmatmul.mubr.f32.gmra.mrb[0].mxu0 %v321
    %v491 = vpop.f32.mrb[0].mxu0
    %v492 = vadd.f32 %v368, %v491
    %v493 = vpop.f32.mrb[0].mxu0
    %494 = vmatprep.mubr.f32.mxu0 %v324
    %495 = vmatmul.mubr.f32.gmra.mrb[0].mxu0 %v323
    %v496 = vpop.f32.mrb[0].mxu0
    %v497 = vadd.f32 %v368, %v496
    %v498 = vpop.f32.mrb[0].mxu0
    %499 = vmatprep.mubr.f32.mxu0 %v326
    %500 = vmatmul.mubr.f32.gmra.mrb[0].mxu0 %v325
    %v501 = vpop.f32.mrb[0].mxu0
    %v502 = vadd.f32 %v368, %v501
    %v503 = vpop.f32.mrb[0].mxu0
    %504 = vmatprep.mubr.f32.mxu0 %v328
    %505 = vmatmul.mubr.f32.gmra.mrb[0].mxu0 %v327
    %v506 = vpop.f32.mrb[0].mxu0
    %v507 = vadd.f32 %v368, %v506
    %v508 = vpop.f32.mrb[0].mxu0
    %509 = vmatprep.mubr.f32.mxu0 %v330
    %510 = vmatmul.mubr.f32.gmra.mrb[0].mxu0 %v329
    %v511 = vpop.f32.mrb[0].mxu0
    %v512 = vadd.f32 %v368, %v511
    %v513 = vpop.f32.mrb[0].mxu0
    %514 = vdwg.mxu0
    %v515 = vmax.f32 %v437, 0.0
    %v516 = vmax.f32 %v442, 0.0
    %v517 = vmax.f32 %v447, 0.0
    %v518 = vmax.f32 %v452, 0.0
    %v519 = vmax.f32 %v457, 0.0
    %v520 = vmax.f32 %v462, 0.0
    %v521 = vmax.f32 %v467, 0.0
    %v522 = vmax.f32 %v472, 0.0
    %v523 = vmax.f32 %v477, 0.0
    %v524 = vmax.f32 %v482, 0.0
    %v525 = vmax.f32 %v487, 0.0
    %v526 = vmax.f32 %v492, 0.0
    %v527 = vmax.f32 %v497, 0.0
    %v528 = vmax.f32 %v502, 0.0
    %v529 = vmax.f32 %v507, 0.0
    %v530 = vmax.f32 %v512, 0.0
    %v531 = vld [vmem:[%s6] sm:$0x1]
    %v533 = vlaneseq
    %v534 = vshrl.u32 %v533, 7
    %v535 = vsub.s32 0, %v534
    %v536 = vrot.slane %v531, %v535
    %v538 = vmul.f32 %v515, %v536
    %v539 = vmul.f32 %v516, %v536
    %v540 = vmul.f32 %v517, %v536
    %v541 = vmul.f32 %v518, %v536
    %v542 = vmul.f32 %v519, %v536
    %v543 = vmul.f32 %v520, %v536
    %v544 = vmul.f32 %v521, %v536
    %v545 = vmul.f32 %v522, %v536
    %v546 = vmul.f32 %v523, %v536
    %v547 = vmul.f32 %v524, %v536
    %v548 = vmul.f32 %v525, %v536
    %v549 = vmul.f32 %v526, %v536
    %v550 = vmul.f32 %v527, %v536
    %v551 = vmul.f32 %v528, %v536
    %v552 = vmul.f32 %v529, %v536
    %v553 = vmul.f32 %v530, %v536
    %554 = vadd.xlane.f32.xlu0 %v538
    %v555 = vpop.xlane.xlu0 %554
    %556 = vadd.xlane.f32.xlu0 %v539
    %v557 = vpop.xlane.xlu0 %556
    %558 = vadd.xlane.f32.xlu0 %v540
    %v559 = vpop.xlane.xlu0 %558
    %560 = vadd.xlane.f32.xlu0 %v541
    %v561 = vpop.xlane.xlu0 %560
    %562 = vadd.xlane.f32.xlu0 %v542
    %v563 = vpop.xlane.xlu0 %562
    %564 = vadd.xlane.f32.xlu0 %v543
    %v565 = vpop.xlane.xlu0 %564
    %566 = vadd.xlane.f32.xlu0 %v544
    %v567 = vpop.xlane.xlu0 %566
    %568 = vadd.xlane.f32.xlu0 %v545
    %v569 = vpop.xlane.xlu0 %568
    %570 = vadd.xlane.f32.xlu0 %v546
    %v571 = vpop.xlane.xlu0 %570
    %572 = vadd.xlane.f32.xlu0 %v547
    %v573 = vpop.xlane.xlu0 %572
    %574 = vadd.xlane.f32.xlu0 %v548
    %v575 = vpop.xlane.xlu0 %574
    %576 = vadd.xlane.f32.xlu0 %v549
    %v577 = vpop.xlane.xlu0 %576
    %578 = vadd.xlane.f32.xlu0 %v550
    %v579 = vpop.xlane.xlu0 %578
    %580 = vadd.xlane.f32.xlu0 %v551
    %v581 = vpop.xlane.xlu0 %580
    %582 = vadd.xlane.f32.xlu0 %v552
    %v583 = vpop.xlane.xlu0 %582
    %584 = vadd.xlane.f32.xlu0 %v553
    %v585 = vpop.xlane.xlu0 %584
    %v586 = vld [vmem:[#allocation2] sm:$0x1]
    %v588 = vlaneseq
    %v589 = vshrl.u32 %v588, 7
    %v590 = vsub.s32 0, %v589
    %v591 = vrot.slane %v586, %v590
    %v593 = vadd.f32 %v555, %v591
    %v594 = vadd.f32 %v557, %v591
    %v595 = vadd.f32 %v559, %v591
    %v596 = vadd.f32 %v561, %v591
    %v597 = vadd.f32 %v563, %v591
    %v598 = vadd.f32 %v565, %v591
    %v599 = vadd.f32 %v567, %v591
    %v600 = vadd.f32 %v569, %v591
    %v601 = vadd.f32 %v571, %v591
    %v602 = vadd.f32 %v573, %v591
    %v603 = vadd.f32 %v575, %v591
    %v604 = vadd.f32 %v577, %v591
    %v605 = vadd.f32 %v579, %v591
    %v606 = vadd.f32 %v581, %v591
    %v607 = vadd.f32 %v583, %v591
    %v608 = vadd.f32 %v585, %v591
    %v609 = vsub.f32 0.0, %v593
    %v610 = vsub.f32 0.0, %v594
    %v611 = vsub.f32 0.0, %v595
    %v612 = vsub.f32 0.0, %v596
    %v613 = vsub.f32 0.0, %v597
    %v614 = vsub.f32 0.0, %v598
    %v615 = vsub.f32 0.0, %v599
    %v616 = vsub.f32 0.0, %v600
    %v617 = vsub.f32 0.0, %v601
    %v618 = vsub.f32 0.0, %v602
    %v619 = vsub.f32 0.0, %v603
    %v620 = vsub.f32 0.0, %v604
    %v621 = vsub.f32 0.0, %v605
    %v622 = vsub.f32 0.0, %v606
    %v623 = vsub.f32 0.0, %v607
    %v624 = vsub.f32 0.0, %v608
    %v625 = vmul.f32 %v609, 1.442695
    %v626 = vpow.pop %v625
    %v627 = vmul.f32 %v610, 1.442695
    %v628 = vpow.pop %v627
    %v629 = vmul.f32 %v611, 1.442695
    %v630 = vpow.pop %v629
    %v631 = vmul.f32 %v612, 1.442695
    %v632 = vpow.pop %v631
    %v633 = vmul.f32 %v613, 1.442695
    %v634 = vpow.pop %v633
    %v635 = vmul.f32 %v614, 1.442695
    %v636 = vpow.pop %v635
    %v637 = vmul.f32 %v615, 1.442695
    %v638 = vpow.pop %v637
    %v639 = vmul.f32 %v616, 1.442695
    %v640 = vpow.pop %v639
    %v641 = vmul.f32 %v617, 1.442695
    %v642 = vpow.pop %v641
    %v643 = vmul.f32 %v618, 1.442695
    %v644 = vpow.pop %v643
    %v645 = vmul.f32 %v619, 1.442695
    %v646 = vpow.pop %v645
    %v647 = vmul.f32 %v620, 1.442695
    %v648 = vpow.pop %v647
    %v649 = vmul.f32 %v621, 1.442695
    %v650 = vpow.pop %v649
    %v651 = vmul.f32 %v622, 1.442695
    %v652 = vpow.pop %v651
    %v653 = vmul.f32 %v623, 1.442695
    %v654 = vpow.pop %v653
    %v655 = vmul.f32 %v624, 1.442695
    %v656 = vpow.pop %v655
    %v657 = vadd.f32 %v626, 1.0
    %v658 = vadd.f32 %v628, 1.0
    %v659 = vadd.f32 %v630, 1.0
    %v660 = vadd.f32 %v632, 1.0
    %v661 = vadd.f32 %v634, 1.0
    %v662 = vadd.f32 %v636, 1.0
    %v663 = vadd.f32 %v638, 1.0
    %v664 = vadd.f32 %v640, 1.0
    %v665 = vadd.f32 %v642, 1.0
    %v666 = vadd.f32 %v644, 1.0
    %v667 = vadd.f32 %v646, 1.0
    %v668 = vadd.f32 %v648, 1.0
    %v669 = vadd.f32 %v650, 1.0
    %v670 = vadd.f32 %v652, 1.0
    %v671 = vadd.f32 %v654, 1.0
    %v672 = vadd.f32 %v656, 1.0
    %v673 = vrcp.pop %v657
    %v674 = vmul.f32 1.0, %v673
    %v675 = vrcp.pop %v658
    %v676 = vmul.f32 1.0, %v675
    %v677 = vrcp.pop %v659
    %v678 = vmul.f32 1.0, %v677
    %v679 = vrcp.pop %v660
    %v680 = vmul.f32 1.0, %v679
    %v681 = vrcp.pop %v661
    %v682 = vmul.f32 1.0, %v681
    %v683 = vrcp.pop %v662
    %v684 = vmul.f32 1.0, %v683
    %v685 = vrcp.pop %v663
    %v686 = vmul.f32 1.0, %v685
    %v687 = vrcp.pop %v664
    %v688 = vmul.f32 1.0, %v687
    %v689 = vrcp.pop %v665
    %v690 = vmul.f32 1.0, %v689
    %v691 = vrcp.pop %v666
    %v692 = vmul.f32 1.0, %v691
    %v693 = vrcp.pop %v667
    %v694 = vmul.f32 1.0, %v693
    %v695 = vrcp.pop %v668
    %v696 = vmul.f32 1.0, %v695
    %v697 = vrcp.pop %v669
    %v698 = vmul.f32 1.0, %v697
    %v699 = vrcp.pop %v670
    %v700 = vmul.f32 1.0, %v699
    %v701 = vrcp.pop %v671
    %v702 = vmul.f32 1.0, %v701
    %v703 = vrcp.pop %v672
    %v704 = vmul.f32 1.0, %v703
    %v705 = vld [vmem:[%s5] sm:$0x1]
    %v707 = vlaneseq
    %v708 = vshrl.u32 %v707, 7
    %v709 = vsub.s32 0, %v708
    %v710 = vrot.slane %v705, %v709
    %v712 = vadd.f32 %v437, %v710
    %v713 = vadd.f32 %v442, %v710
    %v714 = vadd.f32 %v447, %v710
    %v715 = vadd.f32 %v452, %v710
    %v716 = vadd.f32 %v457, %v710
    %v717 = vadd.f32 %v462, %v710
    %v718 = vadd.f32 %v467, %v710
    %v719 = vadd.f32 %v472, %v710
    %v720 = vadd.f32 %v477, %v710
    %v721 = vadd.f32 %v482, %v710
    %v722 = vadd.f32 %v487, %v710
    %v723 = vadd.f32 %v492, %v710
    %v724 = vadd.f32 %v497, %v710
    %v725 = vadd.f32 %v502, %v710
    %v726 = vadd.f32 %v507, %v710
    %v727 = vadd.f32 %v512, %v710
    %728 = vmax.xlane.f32.xlu0 %v712
    %v729 = vpop.xlane.xlu0 %728
    %730 = vmax.xlane.f32.xlu0 %v713
    %v731 = vpop.xlane.xlu0 %730
    %732 = vmax.xlane.f32.xlu0 %v714
    %v733 = vpop.xlane.xlu0 %732
    %734 = vmax.xlane.f32.xlu0 %v715
    %v735 = vpop.xlane.xlu0 %734
    %736 = vmax.xlane.f32.xlu0 %v716
    %v737 = vpop.xlane.xlu0 %736
    %738 = vmax.xlane.f32.xlu0 %v717
    %v739 = vpop.xlane.xlu0 %738
    %740 = vmax.xlane.f32.xlu0 %v718
    %v741 = vpop.xlane.xlu0 %740
    %742 = vmax.xlane.f32.xlu0 %v719
    %v743 = vpop.xlane.xlu0 %742
    %744 = vmax.xlane.f32.xlu0 %v720
    %v745 = vpop.xlane.xlu0 %744
    %746 = vmax.xlane.f32.xlu0 %v721
    %v747 = vpop.xlane.xlu0 %746
    %748 = vmax.xlane.f32.xlu0 %v722
    %v749 = vpop.xlane.xlu0 %748
    %750 = vmax.xlane.f32.xlu0 %v723
    %v751 = vpop.xlane.xlu0 %750
    %752 = vmax.xlane.f32.xlu0 %v724
    %v753 = vpop.xlane.xlu0 %752
    %754 = vmax.xlane.f32.xlu0 %v725
    %v755 = vpop.xlane.xlu0 %754
    %756 = vmax.xlane.f32.xlu0 %v726
    %v757 = vpop.xlane.xlu0 %756
    %758 = vmax.xlane.f32.xlu0 %v727
    %v759 = vpop.xlane.xlu0 %758
    %v760 = vsub.f32 %v712, %v729
    %v761 = vsub.f32 %v713, %v731
    %v762 = vsub.f32 %v714, %v733
    %v763 = vsub.f32 %v715, %v735
    %v764 = vsub.f32 %v716, %v737
    %v765 = vsub.f32 %v717, %v739
    %v766 = vsub.f32 %v718, %v741
    %v767 = vsub.f32 %v719, %v743
    %v768 = vsub.f32 %v720, %v745
    %v769 = vsub.f32 %v721, %v747
    %v770 = vsub.f32 %v722, %v749
    %v771 = vsub.f32 %v723, %v751
    %v772 = vsub.f32 %v724, %v753
    %v773 = vsub.f32 %v725, %v755
    %v774 = vsub.f32 %v726, %v757
    %v775 = vsub.f32 %v727, %v759
    %v776 = vmul.f32 %v760, 1.442695
    %v777 = vpow.pop %v776
    %v778 = vmul.f32 %v761, 1.442695
    %v779 = vpow.pop %v778
    %v780 = vmul.f32 %v762, 1.442695
    %v781 = vpow.pop %v780
    %v782 = vmul.f32 %v763, 1.442695
    %v783 = vpow.pop %v782
    %v784 = vmul.f32 %v764, 1.442695
    %v785 = vpow.pop %v784
    %v786 = vmul.f32 %v765, 1.442695
    %v787 = vpow.pop %v786
    %v788 = vmul.f32 %v766, 1.442695
    %v789 = vpow.pop %v788
    %v790 = vmul.f32 %v767, 1.442695
    %v791 = vpow.pop %v790
    %v792 = vmul.f32 %v768, 1.442695
    %v793 = vpow.pop %v792
    %v794 = vmul.f32 %v769, 1.442695
    %v795 = vpow.pop %v794
    %v796 = vmul.f32 %v770, 1.442695
    %v797 = vpow.pop %v796
    %v798 = vmul.f32 %v771, 1.442695
    %v799 = vpow.pop %v798
    %v800 = vmul.f32 %v772, 1.442695
    %v801 = vpow.pop %v800
    %v802 = vmul.f32 %v773, 1.442695
    %v803 = vpow.pop %v802
    %v804 = vmul.f32 %v774, 1.442695
    %v805 = vpow.pop %v804
    %v806 = vmul.f32 %v775, 1.442695
    %v807 = vpow.pop %v806
    %808 = vadd.xlane.f32.xlu0 %v777
    %v809 = vpop.xlane.xlu0 %808
    %810 = vadd.xlane.f32.xlu0 %v779
    %v811 = vpop.xlane.xlu0 %810
    %812 = vadd.xlane.f32.xlu0 %v781
    %v813 = vpop.xlane.xlu0 %812
    %814 = vadd.xlane.f32.xlu0 %v783
    %v815 = vpop.xlane.xlu0 %814
    %816 = vadd.xlane.f32.xlu0 %v785
    %v817 = vpop.xlane.xlu0 %816
    %818 = vadd.xlane.f32.xlu0 %v787
    %v819 = vpop.xlane.xlu0 %818
    %820 = vadd.xlane.f32.xlu0 %v789
    %v821 = vpop.xlane.xlu0 %820
    %822 = vadd.xlane.f32.xlu0 %v791
    %v823 = vpop.xlane.xlu0 %822
    %824 = vadd.xlane.f32.xlu0 %v793
    %v825 = vpop.xlane.xlu0 %824
    %826 = vadd.xlane.f32.xlu0 %v795
    %v827 = vpop.xlane.xlu0 %826
    %828 = vadd.xlane.f32.xlu0 %v797
    %v829 = vpop.xlane.xlu0 %828
    %830 = vadd.xlane.f32.xlu0 %v799
    %v831 = vpop.xlane.xlu0 %830
    %832 = vadd.xlane.f32.xlu0 %v801
    %v833 = vpop.xlane.xlu0 %832
    %834 = vadd.xlane.f32.xlu0 %v803
    %v835 = vpop.xlane.xlu0 %834
    %836 = vadd.xlane.f32.xlu0 %v805
    %v837 = vpop.xlane.xlu0 %836
    %838 = vadd.xlane.f32.xlu0 %v807
    %v839 = vpop.xlane.xlu0 %838
    %v840 = vrcp.pop %v809
    %v841 = vrcp.pop %v811
    %v842 = vrcp.pop %v813
    %v843 = vrcp.pop %v815
    %v844 = vrcp.pop %v817
    %v845 = vrcp.pop %v819
    %v846 = vrcp.pop %v821
    %v847 = vrcp.pop %v823
    %v848 = vrcp.pop %v825
    %v849 = vrcp.pop %v827
    %v850 = vrcp.pop %v829
    %v851 = vrcp.pop %v831
    %v852 = vrcp.pop %v833
    %v853 = vrcp.pop %v835
    %v854 = vrcp.pop %v837
    %v855 = vrcp.pop %v839
    %v856 = vmul.f32 %v809, %v840
    %v857 = vmul.f32 %v811, %v841
    %v858 = vmul.f32 %v813, %v842
    %v859 = vmul.f32 %v815, %v843
    %v860 = vmul.f32 %v817, %v844
    %v861 = vmul.f32 %v819, %v845
    %v862 = vmul.f32 %v821, %v846
    %v863 = vmul.f32 %v823, %v847
    %v864 = vmul.f32 %v825, %v848
    %v865 = vmul.f32 %v827, %v849
    %v866 = vmul.f32 %v829, %v850
    %v867 = vmul.f32 %v831, %v851
    %v868 = vmul.f32 %v833, %v852
    %v869 = vmul.f32 %v835, %v853
    %v870 = vmul.f32 %v837, %v854
    %v871 = vmul.f32 %v839, %v855
    %v872 = vsub.f32 2.0, %v856
    %v873 = vsub.f32 2.0, %v857
    %v874 = vsub.f32 2.0, %v858
    %v875 = vsub.f32 2.0, %v859
    %v876 = vsub.f32 2.0, %v860
    %v877 = vsub.f32 2.0, %v861
    %v878 = vsub.f32 2.0, %v862
    %v879 = vsub.f32 2.0, %v863
    %v880 = vsub.f32 2.0, %v864
    %v881 = vsub.f32 2.0, %v865
    %v882 = vsub.f32 2.0, %v866
    %v883 = vsub.f32 2.0, %v867
    %v884 = vsub.f32 2.0, %v868
    %v885 = vsub.f32 2.0, %v869
    %v886 = vsub.f32 2.0, %v870
    %v887 = vsub.f32 2.0, %v871
    %v888 = vmul.f32 %v840, %v872
    %v889 = vmul.f32 %v841, %v873
    %v890 = vmul.f32 %v842, %v874
    %v891 = vmul.f32 %v843, %v875
    %v892 = vmul.f32 %v844, %v876
    %v893 = vmul.f32 %v845, %v877
    %v894 = vmul.f32 %v846, %v878
    %v895 = vmul.f32 %v847, %v879
    %v896 = vmul.f32 %v848, %v880
    %v897 = vmul.f32 %v849, %v881
    %v898 = vmul.f32 %v850, %v882
    %v899 = vmul.f32 %v851, %v883
    %v900 = vmul.f32 %v852, %v884
    %v901 = vmul.f32 %v853, %v885
    %v902 = vmul.f32 %v854, %v886
    %v903 = vmul.f32 %v855, %v887
    %v904 = vmul.f32 %v777, %v888
    %v905 = vmul.f32 %v779, %v889
    %v906 = vmul.f32 %v781, %v890
    %v907 = vmul.f32 %v783, %v891
    %v908 = vmul.f32 %v785, %v892
    %v909 = vmul.f32 %v787, %v893
    %v910 = vmul.f32 %v789, %v894
    %v911 = vmul.f32 %v791, %v895
    %v912 = vmul.f32 %v793, %v896
    %v913 = vmul.f32 %v795, %v897
    %v914 = vmul.f32 %v797, %v898
    %v915 = vmul.f32 %v799, %v899
    %v916 = vmul.f32 %v801, %v900
    %v917 = vmul.f32 %v803, %v901
    %v918 = vmul.f32 %v805, %v902
    %v919 = vmul.f32 %v807, %v903
    %921 = vset.pattern.permute.xlu0 0
    %922 = vperm.xlu0 %921, %v674
    %v923 = vpop.permute.xlu0 %922
    %926 = vset.pattern.permute.xlu0 0
    %927 = vperm.xlu0 %926, %v676
    %v928 = vpop.permute.xlu0 %927
    %931 = vset.pattern.permute.xlu0 0
    %932 = vperm.xlu0 %931, %v678
    %v933 = vpop.permute.xlu0 %932
    %936 = vset.pattern.permute.xlu0 0
    %937 = vperm.xlu0 %936, %v680
    %v938 = vpop.permute.xlu0 %937
    %941 = vset.pattern.permute.xlu0 0
    %942 = vperm.xlu0 %941, %v682
    %v943 = vpop.permute.xlu0 %942
    %946 = vset.pattern.permute.xlu0 0
    %947 = vperm.xlu0 %946, %v684
    %v948 = vpop.permute.xlu0 %947
    %951 = vset.pattern.permute.xlu0 0
    %952 = vperm.xlu0 %951, %v686
    %v953 = vpop.permute.xlu0 %952
    %956 = vset.pattern.permute.xlu0 0
    %957 = vperm.xlu0 %956, %v688
    %v958 = vpop.permute.xlu0 %957
    %961 = vset.pattern.permute.xlu0 0
    %962 = vperm.xlu0 %961, %v690
    %v963 = vpop.permute.xlu0 %962
    %966 = vset.pattern.permute.xlu0 0
    %967 = vperm.xlu0 %966, %v692
    %v968 = vpop.permute.xlu0 %967
    %971 = vset.pattern.permute.xlu0 0
    %972 = vperm.xlu0 %971, %v694
    %v973 = vpop.permute.xlu0 %972
    %976 = vset.pattern.permute.xlu0 0
    %977 = vperm.xlu0 %976, %v696
    %v978 = vpop.permute.xlu0 %977
    %981 = vset.pattern.permute.xlu0 0
    %982 = vperm.xlu0 %981, %v698
    %v983 = vpop.permute.xlu0 %982
    %986 = vset.pattern.permute.xlu0 0
    %987 = vperm.xlu0 %986, %v700
    %v988 = vpop.permute.xlu0 %987
    %991 = vset.pattern.permute.xlu0 0
    %992 = vperm.xlu0 %991, %v702
    %v993 = vpop.permute.xlu0 %992
    %996 = vset.pattern.permute.xlu0 0
    %997 = vperm.xlu0 %996, %v704
    %v998 = vpop.permute.xlu0 %997
    %v1000 = vmul.f32 %v904, %v923
    %v1001 = vmul.f32 %v905, %v928
    %v1002 = vmul.f32 %v906, %v933
    %v1003 = vmul.f32 %v907, %v938
    %v1004 = vmul.f32 %v908, %v943
    %v1005 = vmul.f32 %v909, %v948
    %v1006 = vmul.f32 %v910, %v953
    %v1007 = vmul.f32 %v911, %v958
    %v1008 = vmul.f32 %v912, %v963
    %v1009 = vmul.f32 %v913, %v968
    %v1010 = vmul.f32 %v914, %v973
    %v1011 = vmul.f32 %v915, %v978
    %v1012 = vmul.f32 %v916, %v983
    %v1013 = vmul.f32 %v917, %v988
    %v1014 = vmul.f32 %v918, %v993
    %v1015 = vmul.f32 %v919, %v998
    %1016 = vst [vmem:[%s8] sm:$0xff] %v1000
    %1017 = vst [vmem:[%s8 + $0x8] sm:$0xff] %v1001
    %1018 = vst [vmem:[%s8 + $0x10] sm:$0xff] %v1002
    %1019 = vst [vmem:[%s8 + $0x18] sm:$0xff] %v1003
    %1020 = vst [vmem:[%s8 + $0x20] sm:$0xff] %v1004
    %1021 = vst [vmem:[%s8 + $0x28] sm:$0xff] %v1005
    %1022 = vst [vmem:[%s8 + $0x30] sm:$0xff] %v1006
    %1023 = vst [vmem:[%s8 + $0x38] sm:$0xff] %v1007
    %1024 = vst [vmem:[%s8 + $0x40] sm:$0xff] %v1008
    %1025 = vst [vmem:[%s8 + $0x48] sm:$0xff] %v1009
    %1026 = vst [vmem:[%s8 + $0x50] sm:$0xff] %v1010
    %1027 = vst [vmem:[%s8 + $0x58] sm:$0xff] %v1011
    %1028 = vst [vmem:[%s8 + $0x60] sm:$0xff] %v1012
    %1029 = vst [vmem:[%s8 + $0x68] sm:$0xff] %v1013
    %1030 = vst [vmem:[%s8 + $0x70] sm:$0xff] %v1014
    %1031 = vst [vmem:[%s8 + $0x78] sm:$0xff] %v1015
    // Predicated region
    $region38: #{emotional_contagion.1} parent=1 // pred_check
      _
    $region39: #{emotional_contagion.1} parent=1 // pred_check_branch
      %1033 = sbr.rel (0) target = $region41
    $region40: #{emotional_contagion.1} parent=1 // pred_region
      _
    $region41: #{emotional_contagion.1} parent=1 // pred_fallthru
      _
    // Predicated region
    $region42: #{emotional_contagion.1} parent=1 // pred_check
      _
    $region43: #{emotional_contagion.1} parent=1 // pred_check_branch
      %1035 = sbr.rel (0) target = $region45
    $region44: #{emotional_contagion.1} parent=1 // pred_region
      _
    $region45: #{emotional_contagion.1} parent=1 // pred_fallthru
      _
    %1036 = vsyncpa [#allocation4], 1

</llo_original>
